<compile_context>
chip_gen: v7x
topology: tpu7x:2x2x1
jax: 0.10.0
libtpu: 0.0.40
codegen_flags: <defaults>
</compile_context>

<pallas_src>
import functools

import jax
import jax.numpy as jnp
from jax.experimental import pallas as pl
from jax.experimental.pallas import tpu as pltpu


def _round_up(x, m):
    return ((x + m - 1) // m) * m


def _crosse_loss_kernel(score_ref, label_ref, out_ref, acc_ref):
    j = pl.program_id(1)
    nj = pl.num_programs(1)

    s = score_ref[...].astype(jnp.float32)
    lbl = label_ref[...].astype(jnp.float32)

    # Fused single-log form (exactly equivalent to the two-term reference).
    w = jnp.minimum(jnp.abs(lbl), 1.0)              # == clip(|label|, 0, 1)
    arg = jnp.where(lbl > 0, s, 1.0 - s)
    terms = jnp.log(jnp.clip(arg, 1e-10, 1.0)) * w  # (tile_m, tile_n)

    tm, tn = terms.shape
    # Fold rows 8 apart onto each other: layout-preserving reshape (splits the
    # major axis only) followed by elementwise vreg adds on the VPU.
    partial = terms.reshape(tm // 8, 8, tn).sum(axis=0)   # (8, tile_n)

    @pl.when(j == 0)
    def _():
        acc_ref[...] = jnp.zeros_like(acc_ref)

    acc_ref[...] += partial

    @pl.when(j == nj - 1)
    def _():
        acc = acc_ref[...]
        # Fold lane groups of 128 onto each other with static, vreg-aligned
        # slices -> a single (8, 128) vreg; still pure VPU adds.  The one and
        # only cross-lane/sublane reduction happens outside the kernel.
        red = acc[:, 0:128]
        for g in range(1, tn // 128):
            red = red + acc[:, g * 128:(g + 1) * 128]
        out_ref[0, :, :] = red


@functools.partial(jax.jit, static_argnames=("tile_m", "tile_n"))
def crosse_loss(score, label, *, tile_m=512, tile_n=1024):
    assert score.shape == label.shape
    assert score.ndim == 2, "layout: [num_triples, num_entities]"
    assert tile_m % 8 == 0 and tile_n % 128 == 0
    M, N = score.shape

    # Clamp tiles to the (aligned) problem size, then pad so the grid divides
    # evenly.  Padded labels are 0 => padded elements contribute exactly 0.
    tm = min(tile_m, _round_up(M, 8))
    tn = min(tile_n, _round_up(N, 128))
    Mp = _round_up(M, tm)
    Np = _round_up(N, tn)
    if (Mp, Np) != (M, N):
        score = jnp.pad(score, ((0, Mp - M), (0, Np - N)))
        label = jnp.pad(label, ((0, Mp - M), (0, Np - N)))

    grid = (Mp // tm, Np // tn)

    partials = pl.pallas_call(
        _crosse_loss_kernel,
        out_shape=jax.ShapeDtypeStruct((grid[0], 8, 128), jnp.float32),
        grid_spec=pltpu.PrefetchScalarGridSpec(
            num_scalar_prefetch=0,
            grid=grid,
            in_specs=[
                pl.BlockSpec((tm, tn), lambda i, j: (i, j)),
                pl.BlockSpec((tm, tn), lambda i, j: (i, j)),
            ],
            out_specs=pl.BlockSpec((1, 8, 128), lambda i, j: (i, 0, 0)),
            scratch_shapes=[pltpu.VMEM((8, tn), jnp.float32)],
        ),
        compiler_params=pltpu.CompilerParams(
            # Row tiles are independent (megacore-shardable on v7x); the
            # column axis accumulates into the scratch / resident output.
            dimension_semantics=("parallel", "arbitrary"),
        ),
    )(score, label)

    # Single tiny reduction + negation outside the kernel.
    return -jnp.sum(partials)


def _reference_loss(score, label):
    s = score.astype(jnp.float32)
    lbl = label.astype(jnp.float32)
    return -jnp.sum(
        jnp.log(jnp.clip(s, 1e-10, 1.0)) * jnp.clip(lbl, 0.0, 1.0)
        + jnp.log(jnp.clip(1.0 - s, 1e-10, 1.0)) * jnp.clip(-lbl, 0.0, 1.0)
    )


if __name__ == "__main__":
    key = jax.random.PRNGKey(0)

    def make_inputs(k, M, N, dtype=jnp.float32):
        k_s, k_l = jax.random.split(k)
        score = jax.random.uniform(
            k_s, (M, N), dtype=jnp.float32, minval=1e-4, maxval=1.0 - 1e-4
        ).astype(dtype)
        label = jax.random.randint(k_l, (M, N), minval=-1, maxval=2).astype(dtype)
        return score, label

    k0, k1, k2 = jax.random.split(key, 3)

    # 1) Small shape, single tile (default tile sizes clamp to the array).
    s0, l0 = make_inputs(k0, 16, 256)
    out0 = crosse_loss(s0, l0)
    jax.block_until_ready(out0)
    ref0 = _reference_loss(s0, l0)
    assert jnp.allclose(out0, ref0, rtol=1e-5, atol=1e-3), (out0, ref0)

    # 2) Ragged shape exercising the 2-D grid, row/column padding and the
    #    cross-column accumulation path (grid = (3, 3)).
    s1, l1 = make_inputs(k1, 40, 384)
    out1 = crosse_loss(s1, l1, tile_m=16, tile_n=128)
    jax.block_until_ready(out1)
    ref1 = _reference_loss(s1, l1)
    assert jnp.allclose(out1, ref1, rtol=1e-5, atol=1e-3), (out1, ref1)

    # 3) bfloat16 inputs (kernel upcasts internally; halves HBM traffic).
    s2, l2 = make_inputs(k2, 32, 256, dtype=jnp.bfloat16)
    out2 = crosse_loss(s2, l2)
    jax.block_until_ready(out2)
    ref2 = _reference_loss(s2, l2)
    assert jnp.allclose(out2, ref2, rtol=5e-3, atol=1e-1), (out2, ref2)

    print("KERNEL_OK")
</pallas_src>

<mosaic_0001>
module attributes {stable_mosaic.version = 11 : i64} {
  func.func @_crosse_loss_kernel(%arg0: i32, %arg1: i32, %arg2: memref<16x256xf32, #tpu.memory_space<vmem>>, %arg3: memref<16x256xf32, #tpu.memory_space<vmem>>, %arg4: memref<1x8x128xf32, #tpu.memory_space<vmem>>, %arg5: memref<8x256xf32, #tpu.memory_space<vmem>>) attributes {dimension_semantics = [#tpu.dimension_semantics<parallel>, #tpu.dimension_semantics<arbitrary>], iteration_bounds = array<i64: 1, 1>, scalar_prefetch = 0 : i64, scratch_operands = 1 : i64, tpu.core_type = #tpu.core_type<tc>, window_params = [{transform_indices = @transform_0, window_bounds = array<i64: 16, 256>}, {transform_indices = @transform_1, window_bounds = array<i64: 16, 256>}, {transform_indices = @transform_2, window_bounds = array<i64: 1, 8, 128>}]} {
    %c0 = arith.constant 0 : index
    %c0_0 = arith.constant 0 : index
    %0 = vector.load %arg2[%c0, %c0_0] : memref<16x256xf32, #tpu.memory_space<vmem>>, vector<16x256xf32>
    %c0_1 = arith.constant 0 : index
    %c0_2 = arith.constant 0 : index
    %1 = vector.load %arg3[%c0_1, %c0_2] : memref<16x256xf32, #tpu.memory_space<vmem>>, vector<16x256xf32>
    %2 = math.absf %1 : vector<16x256xf32>
    %cst = arith.constant 1.000000e+00 : f32
    %3 = vector.broadcast %cst : f32 to vector<16x256xf32>
    %4 = arith.minimumf %2, %3 : vector<16x256xf32>
    %cst_3 = arith.constant 0.000000e+00 : f32
    %5 = vector.broadcast %cst_3 : f32 to vector<16x256xf32>
    %6 = arith.cmpf ogt, %1, %5 : vector<16x256xf32>
    %cst_4 = arith.constant 1.000000e+00 : f32
    %7 = vector.broadcast %cst_4 : f32 to vector<16x256xf32>
    %8 = arith.subf %7, %0 : vector<16x256xf32>
    %9 = arith.select %6, %0, %8 : vector<16x256xi1>, vector<16x256xf32>
    %cst_5 = arith.constant 1.000000e-10 : f32
    %cst_6 = arith.constant 1.000000e+00 : f32
    %10 = vector.broadcast %cst_5 : f32 to vector<16x256xf32>
    %11 = arith.maximumf %10, %9 : vector<16x256xf32>
    %12 = vector.broadcast %cst_6 : f32 to vector<16x256xf32>
    %13 = arith.minimumf %12, %11 : vector<16x256xf32>
    %14 = math.log %13 : vector<16x256xf32>
    %15 = arith.mulf %14, %4 : vector<16x256xf32>
    %16 = vector.shape_cast %15 : vector<16x256xf32> to vector<2x8x256xf32>
    %cst_7 = arith.constant dense<0.000000e+00> : vector<8x256xf32>
    %17 = vector.multi_reduction <add>, %16, %cst_7 [0] : vector<2x8x256xf32> to vector<8x256xf32>
    %c0_i32 = arith.constant 0 : i32
    %18 = arith.cmpi eq, %arg1, %c0_i32 : i32
    %19 = arith.extui %18 : i1 to i32
    %c0_i32_8 = arith.constant 0 : i32
    %20 = arith.cmpi ne, %19, %c0_i32_8 : i32
    scf.if %20 {
      %cst_15 = arith.constant 0.000000e+00 : f32
      %27 = vector.broadcast %cst_15 : f32 to vector<8x256xf32>
      %c0_16 = arith.constant 0 : index
      %c0_17 = arith.constant 0 : index
      %28 = vector.load %arg5[%c0_16, %c0_17] : memref<8x256xf32, #tpu.memory_space<vmem>>, vector<8x256xf32>
      tpu.vector_store %arg5[%c0_16, %c0_17], %27 {strides = array<i32>} : memref<8x256xf32, #tpu.memory_space<vmem>>, vector<8x256xf32>,
    } else {
    }
    %c0_9 = arith.constant 0 : index
    %c0_10 = arith.constant 0 : index
    %21 = vector.load %arg5[%c0_9, %c0_10] : memref<8x256xf32, #tpu.memory_space<vmem>>, vector<8x256xf32>
    %22 = arith.addf %21, %17 : vector<8x256xf32>
    %c0_11 = arith.constant 0 : index
    %c0_12 = arith.constant 0 : index
    %23 = vector.load %arg5[%c0_11, %c0_12] : memref<8x256xf32, #tpu.memory_space<vmem>>, vector<8x256xf32>
    tpu.vector_store %arg5[%c0_11, %c0_12], %22 {strides = array<i32>} : memref<8x256xf32, #tpu.memory_space<vmem>>, vector<8x256xf32>,
    %c0_i32_13 = arith.constant 0 : i32
    %24 = arith.cmpi eq, %arg1, %c0_i32_13 : i32
    %25 = arith.extui %24 : i1 to i32
    %c0_i32_14 = arith.constant 0 : i32
    %26 = arith.cmpi ne, %25, %c0_i32_14 : i32
    scf.if %26 {
      %c0_15 = arith.constant 0 : index
      %c0_16 = arith.constant 0 : index
      %27 = vector.load %arg5[%c0_15, %c0_16] : memref<8x256xf32, #tpu.memory_space<vmem>>, vector<8x256xf32>
      %28 = vector.extract_strided_slice %27 {offsets = [0, 0], sizes = [8, 128], strides = [1, 1]} : vector<8x256xf32> to vector<8x128xf32>
      %29 = vector.extract_strided_slice %27 {offsets = [0, 128], sizes = [8, 128], strides = [1, 1]} : vector<8x256xf32> to vector<8x128xf32>
      %30 = arith.addf %28, %29 : vector<8x128xf32>
      %c0_17 = arith.constant 0 : index
      %c0_18 = arith.constant 0 : index
      %c0_19 = arith.constant 0 : index
      %31 = vector.load %arg4[%c0_17, %c0_18, %c0_19] : memref<1x8x128xf32, #tpu.memory_space<vmem>>, vector<1x8x128xf32>
      %32 = vector.shape_cast %31 : vector<1x8x128xf32> to vector<8x128xf32>
      %33 = vector.shape_cast %30 : vector<8x128xf32> to vector<1x8x128xf32>
      tpu.vector_store %arg4[%c0_17, %c0_18, %c0_19], %33 {strides = array<i32>} : memref<1x8x128xf32, #tpu.memory_space<vmem>>, vector<1x8x128xf32>,
    } else {
    }
    return
  }
  func.func @transform_0(%arg0: i32, %arg1: i32) -> (i32, i32) {
    %c0_i32 = arith.constant 0 : i32
    return %arg0, %arg1 : i32, i32
  }
  func.func @transform_1(%arg0: i32, %arg1: i32) -> (i32, i32) {
    %c0_i32 = arith.constant 0 : i32
    return %arg0, %arg1 : i32, i32
  }
  func.func @transform_2(%arg0: i32, %arg1: i32) -> (i32, i32, i32) {
    %c0_i32 = arith.constant 0 : i32
    %c0_i32_0 = arith.constant 0 : i32
    %c0_i32_1 = arith.constant 0 : i32
    return %arg0, %c0_i32, %c0_i32_0 : i32, i32, i32
  }
}

</mosaic_0001>

<llo_original>
// kernel: crosse_loss.1
$region0: #{crosse_loss.1}
  #allocation0 [shape = 'u32[]', space=smem, size = 0x4, offset = 0x4, fixed_abs, tag = 'smem constant byte address 0x4 - core index']
  #allocation1 [shape = 'u32[144,128]{1,0:T(1,128)}', space=vmem, size = 0x12000, scoped, tag = 'internal scratch']
  #allocation2 [shape = 'f32[8,256]{1,0:T(8,128)}', space=vmem, size = 0x2000, scoped, tag = 'scratch operand']
  %s0 = inlined_call_operand.hbm [shape: f32[16,256], index: 0, kind: input, shape index: {}]
  %s1 = inlined_call_operand.hbm [shape: f32[16,256], index: 1, kind: input, shape index: {}]
  %s2 = inlined_call_operand.vmem [shape: f32[1,8,128], index: 2, kind: output, shape index: {}]
  %s3 = sld [smem:[#allocation0]]
  $region34: #{crosse_loss.1} parent=0
    _
  %s5 = ssub.s32 1, %s3
  %s6 = scalar_select 0, %s5, %s3
  $region1: #{crosse_loss.1} parent=0
    #allocation3 [shape = 'u8[16384]{0}', space=vmem, size = 0x4000, scoped, tag = 'input window, operand 0, single buffered']
    #allocation4 [shape = 's32[1]{0}', space=sflag, size = 0x4, scoped, tag = 'scoped memory for crosse_loss.1']
    #allocation5 [shape = 'u8[16384]{0}', space=vmem, size = 0x4000, scoped, tag = 'input window, operand 1, single buffered']
    #allocation6 [shape = 's32[1]{0}', space=sflag, size = 0x4, scoped, tag = 'scoped memory for crosse_loss.1']
    %7 = vsyncpa [#allocation4], 0
    %8 = vsyncpa [#allocation6], 0
    // Predicated region
    $region2: #{crosse_loss.1} parent=1 // pred_check
      _
    $region3: #{crosse_loss.1} parent=1 // pred_check_branch
      %10 = sbr.rel (0) target = $region5
    $region4: #{crosse_loss.1} parent=1 // pred_region
      %s12 = ssub.s32 512, 512
      %13 = vsyncadd [#allocation4], %s12
      %s14 = sshll.u32 [#allocation3], 4
      %s15 = int_to_ptr.vmem [resolvable:$true] %s14
      %20 = dma.hbm_to_vmem [thread:$0]  %s0, 512, %s15, [#allocation4], 256, 256, 16
    $region5: #{crosse_loss.1} parent=1 // pred_fallthru
      _
    // Predicated region
    $region6: #{crosse_loss.1} parent=1 // pred_check
      _
    $region7: #{crosse_loss.1} parent=1 // pred_check_branch
      %22 = sbr.rel (0) target = $region9
    $region8: #{crosse_loss.1} parent=1 // pred_region
      %s24 = ssub.s32 512, 512
      %25 = vsyncadd [#allocation6], %s24
      %s26 = sshll.u32 [#allocation5], 4
      %s27 = int_to_ptr.vmem [resolvable:$true] %s26
      %32 = dma.hbm_to_vmem [thread:$0]  %s1, 512, %s27, [#allocation6], 256, 256, 16
    $region9: #{crosse_loss.1} parent=1 // pred_fallthru
      _
    // Predicated region
    $region10: #{crosse_loss.1} parent=1 // pred_check
      _
    $region11: #{crosse_loss.1} parent=1 // pred_check_branch
      %34 = sbr.rel (0) target = $region13
    $region12: #{crosse_loss.1} parent=1 // pred_region
      %35 = dma.done [#allocation4], 512
    $region13: #{crosse_loss.1} parent=1 // pred_fallthru
      _
    // Predicated region
    $region14: #{crosse_loss.1} parent=1 // pred_check
      _
    $region15: #{crosse_loss.1} parent=1 // pred_check_branch
      %37 = sbr.rel (0) target = $region17
    $region16: #{crosse_loss.1} parent=1 // pred_region
      %38 = dma.done [#allocation6], 512
    $region17: #{crosse_loss.1} parent=1 // pred_fallthru
      _
    %v39 = vld [vmem:[#allocation3] sm:$0xff]
    %v40 = vld [vmem:[#allocation3 + $0x8] sm:$0xff]
    %v41 = vld [vmem:[#allocation3 + $0x10] sm:$0xff]
    %v42 = vld [vmem:[#allocation3 + $0x18] sm:$0xff]
    %v43 = vld [vmem:[#allocation5] sm:$0xff]
    %v44 = vld [vmem:[#allocation5 + $0x8] sm:$0xff]
    %v45 = vld [vmem:[#allocation5 + $0x10] sm:$0xff]
    %v46 = vld [vmem:[#allocation5 + $0x18] sm:$0xff]
    %v47 = vand.u32 2147483647, %v43
    %v48 = vand.u32 2147483647, %v44
    %v49 = vand.u32 2147483647, %v45
    %v50 = vand.u32 2147483647, %v46
    %v51 = vmin.f32 %v47, 1.0
    %v52 = vmin.f32 %v48, 1.0
    %v53 = vmin.f32 %v49, 1.0
    %v54 = vmin.f32 %v50, 1.0
    %vm55 = vcmp.gt.f32.partialorder %v43, 0.0
    %vm56 = vcmp.gt.f32.partialorder %v44, 0.0
    %vm57 = vcmp.gt.f32.partialorder %v45, 0.0
    %vm58 = vcmp.gt.f32.partialorder %v46, 0.0
    %v59 = vsub.f32 1.0, %v39
    %v60 = vsub.f32 1.0, %v40
    %v61 = vsub.f32 1.0, %v41
    %v62 = vsub.f32 1.0, %v42
    %v63 = vsel %vm55, %v39, %v59
    %v64 = vsel %vm56, %v40, %v60
    %v65 = vsel %vm57, %v41, %v61
    %v66 = vsel %vm58, %v42, %v62
    %v67 = vmax.f32 %v63, 1e-10
    %v68 = vmax.f32 %v64, 1e-10
    %v69 = vmax.f32 %v65, 1e-10
    %v70 = vmax.f32 %v66, 1e-10
    %v71 = vmin.f32 %v67, 1.0
    %v72 = vmin.f32 %v68, 1.0
    %v73 = vmin.f32 %v69, 1.0
    %v74 = vmin.f32 %v70, 1.0
    %v75 = vlog2.pop %v71
    %v76 = vmul.f32 %v75, 0.6931472
    %v77 = vlog2.pop %v72
    %v78 = vmul.f32 %v77, 0.6931472
    %v79 = vlog2.pop %v73
    %v80 = vmul.f32 %v79, 0.6931472
    %v81 = vlog2.pop %v74
    %v82 = vmul.f32 %v81, 0.6931472
    %v83 = vmul.f32 %v76, %v51
    %v84 = vmul.f32 %v78, %v52
    %v85 = vmul.f32 %v80, %v53
    %v86 = vmul.f32 %v82, %v54
    %v87 = vadd.f32 %v83, %v85
    %v88 = vadd.f32 %v84, %v86
    %p89 = scmp.eq.s32.totalorder 0, 0
    // Predicated region
    $region18: #{crosse_loss.1} parent=1 // pred_check
      %p90 = pneg %p89
    $region19: #{crosse_loss.1} parent=1 // pred_check_branch
      %92 = sbr.rel (%p90) target = $region21
    $region20: #{crosse_loss.1} parent=1 // pred_region
      %93 = vst [vmem:[#allocation2] sm:$0xff] 0.0
      %94 = vst [vmem:[#allocation2 + $0x8] sm:$0xff] 0.0
    $region21: #{crosse_loss.1} parent=1 // pred_fallthru
      _
    %v95 = vld [vmem:[#allocation2] sm:$0xff]
    %v96 = vld [vmem:[#allocation2 + $0x8] sm:$0xff]
    %v97 = vadd.f32 %v95, %v87
    %v98 = vadd.f32 %v96, %v88
    %99 = vst [vmem:[#allocation2] sm:$0xff] %v97
    %100 = vst [vmem:[#allocation2 + $0x8] sm:$0xff] %v98
    // Predicated region
    $region22: #{crosse_loss.1} parent=1 // pred_check
      %p101 = pneg %p89
    $region23: #{crosse_loss.1} parent=1 // pred_check_branch
      %103 = sbr.rel (%p101) target = $region25
    $region24: #{crosse_loss.1} parent=1 // pred_region
      %v104 = vld [vmem:[#allocation2] sm:$0xff]
      %v105 = vld [vmem:[#allocation2 + $0x8] sm:$0xff]
      %v106 = vadd.f32 %v104, %v105
      %107 = vst [vmem:[%s2] sm:$0xff] %v106
    $region25: #{crosse_loss.1} parent=1 // pred_fallthru
      _
    // Predicated region
    $region26: #{crosse_loss.1} parent=1 // pred_check
      _
    $region27: #{crosse_loss.1} parent=1 // pred_check_branch
      %109 = sbr.rel (0) target = $region29
    $region28: #{crosse_loss.1} parent=1 // pred_region
      _
    $region29: #{crosse_loss.1} parent=1 // pred_fallthru
      _
    // Predicated region
    $region30: #{crosse_loss.1} parent=1 // pred_check
      _
    $region31: #{crosse_loss.1} parent=1 // pred_check_branch
      %111 = sbr.rel (0) target = $region33
    $region32: #{crosse_loss.1} parent=1 // pred_region
      _
    $region33: #{crosse_loss.1} parent=1 // pred_fallthru
      _
    %112 = vsyncpa [#allocation4], 1
    %113 = vsyncpa [#allocation6], 1

</llo_original>
